<compile_context>
chip_gen: v7x
topology: tpu7x:2x2x1
jax: 0.10.0
libtpu: 0.0.40
codegen_flags: <defaults>
</compile_context>

<pallas_src>
import functools

import jax
import jax.numpy as jnp
import numpy as np
from jax.experimental import pallas as pl
from jax.experimental.pallas import tpu as pltpu

_LANE = 128
_SUBLANE = 8


# ----------------------------------------------------------------------------
# loss_labels: weighted cross entropy (F.cross_entropy with class weights).
# Kept in XLA per review: tiny problem, kernel launch + single-block DMA > math.
# ----------------------------------------------------------------------------
def loss_labels(pred_logits, target_classes, empty_weight):
    x = pred_logits.astype(jnp.float32)
    logp = jax.nn.log_softmax(x, axis=-1)
    nll = -jnp.take_along_axis(logp, target_classes[..., None], axis=-1)[..., 0]
    w = empty_weight[target_classes].astype(jnp.float32)
    return jnp.sum(w * nll) / jnp.sum(w)          # weighted-mean semantics


# ----------------------------------------------------------------------------
# Pallas kernel: sigmoid focal + dice partial sums for CB classes per step.
#   grid = (B, C/CB, n_spatial); b / class-block axes 'parallel', spatial axis
#   is the reduction with the (1, CB, 32, 128) output block resident in VMEM.
#   rows  0: 8 = focal-loss partial sums
#   rows  8:16 = sum(p * t)   (dice numerator)
#   rows 16:24 = sum(p)       (dice denominator)
#   rows 24:32 = sum(t)       (dice denominator, also -> num_masks presence)
# ----------------------------------------------------------------------------
def _mask_loss_kernel(pm_ref, gt_ref, out_ref, *, alpha, gamma, cb):
    r = pl.program_id(2)

    @pl.when(r == 0)
    def _():
        out_ref[...] = jnp.zeros_like(out_ref)

    c_base = pl.program_id(1) * cb

    x = pm_ref[0].astype(jnp.float32)                      # (CB, TR, 128) logits
    gt = gt_ref[0]                                         # (TR, 128) int32 classes
    tr = x.shape[1]

    # binary targets for the CB classes of this block, built from one gt tile
    cls = c_base + jax.lax.broadcasted_iota(jnp.int32, (cb, tr, _LANE), 0)
    t = (gt[None, :, :] == cls).astype(jnp.float32)        # (CB, TR, 128)

    # one exp(-|x|) feeds both the sigmoid and the stable BCE-with-logits term
    e = jnp.exp(-jnp.abs(x))
    inv = 1.0 / (1.0 + e)
    prob = jnp.where(x >= 0.0, inv, e * inv)               # == sigmoid(x)
    ce = jnp.maximum(x, 0.0) - x * t + jnp.log1p(e)        # bce_with_logits
    p_t = prob * t + (1.0 - prob) * (1.0 - t)
    q = 1.0 - p_t
    if gamma == 2.0:
        mod = q * q                                        # avoid pow lowering
    else:
        mod = jnp.power(jnp.maximum(q, 1e-30), gamma)
    loss = ce * mod
    if alpha >= 0:
        loss = (alpha * t + (1.0 - alpha) * (1.0 - t)) * loss

    # (CB, TR, 128) -> (CB, 8, 128): sublane-aligned reshape + VALU-only adds
    # (no XLU cross-lane reduce); accumulate into the resident output block.
    def part(v):
        return jnp.sum(v.reshape(cb, tr // _SUBLANE, _SUBLANE, _LANE), axis=1)

    out_ref[0, :, 0:8, :] += part(loss)
    out_ref[0, :, 8:16, :] += part(prob * t)
    out_ref[0, :, 16:24, :] += part(prob)
    out_ref[0, :, 24:32, :] += part(t)


# ----------------------------------------------------------------------------
# Generation-aware sizing helpers
# ----------------------------------------------------------------------------
def _vmem_limit_bytes():
    """VMEM limit: half of per-core capacity, capped at 64 MiB (v7x has 64 MiB/TC)."""
    cap = 64 * 1024 * 1024
    try:
        cap = pltpu.get_tpu_info().vmem_capacity_bytes
    except Exception:
        pass
    return int(min(cap // 2, 64 * 1024 * 1024))


def _pick_class_block(num_classes, num_queries, max_cb=8):
    """Classes per grid step; identity matching needs ceil(C/CB)*CB <= Q."""
    cb = max_cb
    while cb > 1 and -(-num_classes // cb) * cb > num_queries:
        cb //= 2
    return cb


def _pick_tile_rows(nr, cb, itemsize, vmem_limit):
    """Largest multiple-of-8 divisor of nr whose double-buffered tiles
    (pred: CB classes + gt, 2 pipeline buffers each) fit ~half the VMEM limit."""
    bytes_per_row = 2 * _LANE * (cb * itemsize + 4)
    max_rows = max(_SUBLANE, (vmem_limit // 2) // bytes_per_row)
    best = _SUBLANE
    for cand in range(_SUBLANE, nr + 1, _SUBLANE):
        if nr % cand == 0 and cand <= max_rows:
            best = cand
    return best


# ----------------------------------------------------------------------------
# loss_masks hot path: per-(image, class) partial sums via Pallas
# ----------------------------------------------------------------------------
def mask_loss_partials_pallas(pred_masks, gt_masks, num_classes,
                              alpha=0.25, gamma=2.0,
                              class_block=None, tile_rows=None):
    """Returns (focal_sum, pt_sum, p_sum, t_sum), each [B, C]; the matched
    prediction for class c is query q = c (identity-matcher stub)."""
    B, Q, H, W = pred_masks.shape
    C = num_classes
    L = H * W
    itemsize = np.dtype(pred_masks.dtype).itemsize

    cb = class_block if class_block is not None else _pick_class_block(C, Q)
    c_blocks = -(-C // cb)
    c_pad = c_blocks * cb
    assert c_pad <= Q, "identity matching needs ceil(C/CB)*CB <= num_queries"

    # lane-dense flat spatial layout: pad L to a multiple of 8*128 so every tile
    # is whole (8, 128) vregs (unmasked vld/vst) regardless of W.
    l_pad = -(-L // (_SUBLANE * _LANE)) * (_SUBLANE * _LANE)
    pm = pred_masks.reshape(B, Q, L)
    gt = gt_masks.reshape(B, L).astype(jnp.int32)
    if l_pad != L:
        # pad logits = -1e4 -> sigmoid == 0; pad gt = C (no real class) -> t == 0,
        # so padded elements contribute exactly nothing to any partial sum.
        # TODO(synk): an in-kernel iota mask would avoid this pad copy for awkward H*W.
        pm = jnp.pad(pm, ((0, 0), (0, 0), (0, l_pad - L)), constant_values=-1e4)
        gt = jnp.pad(gt, ((0, 0), (0, l_pad - L)), constant_values=C)
    nr = l_pad // _LANE
    pm = pm.reshape(B, Q, nr, _LANE)
    gt = gt.reshape(B, nr, _LANE)

    vmem_limit = _vmem_limit_bytes()
    tr = tile_rows if tile_rows is not None else _pick_tile_rows(
        nr, cb, itemsize, vmem_limit)
    assert nr % tr == 0 and tr % _SUBLANE == 0
    n_r = nr // tr

    kernel = functools.partial(_mask_loss_kernel, alpha=alpha, gamma=gamma, cb=cb)

    total = B * c_pad * l_pad
    cost = pl.CostEstimate(
        flops=int(30 * total),
        transcendentals=int(3 * total),
        bytes_accessed=int(B * c_pad * l_pad * itemsize       # pred, read once
                           + B * c_blocks * l_pad * 4         # gt, re-read per class block
                           + B * c_pad * 32 * _LANE * 4))     # partial-sum writeback

    partials = pl.pallas_call(
        kernel,
        out_shape=jax.ShapeDtypeStruct((B, c_pad, 32, _LANE), jnp.float32),
        grid_spec=pltpu.PrefetchScalarGridSpec(
            num_scalar_prefetch=0,
            grid=(B, c_blocks, n_r),
            in_specs=[
                # matched predictions DMA'd straight from [B, Q, nr, 128]:
                # query block == class block (identity matching)
                pl.BlockSpec((1, cb, tr, _LANE), lambda b, c, r: (b, c, r, 0)),
                # one gt tile serves all CB classes of this step
                pl.BlockSpec((1, tr, _LANE), lambda b, c, r: (b, r, 0)),
            ],
            out_specs=pl.BlockSpec((1, cb, 32, _LANE), lambda b, c, r: (b, c, 0, 0)),
        ),
        compiler_params=pltpu.CompilerParams(
            # b / class-block axes are 'parallel' (v7x megacore can shard them);
            # the flat-spatial axis is the 'arbitrary' reduction.
            dimension_semantics=("parallel", "parallel", "arbitrary"),
            vmem_limit_bytes=vmem_limit,
        ),
        cost_estimate=cost,
    )(pm, gt)

    focal = partials[:, :C, 0:8, :].sum(axis=(-1, -2))
    pt = partials[:, :C, 8:16, :].sum(axis=(-1, -2))
    p = partials[:, :C, 16:24, :].sum(axis=(-1, -2))
    t = partials[:, :C, 24:32, :].sum(axis=(-1, -2))
    return focal, pt, p, t


# ----------------------------------------------------------------------------
# SetCriterion wrapper (glue: target construction, matching stub, reductions)
# ----------------------------------------------------------------------------
class SetCriterionPallas:
    def __init__(self, num_classes, eos_coef=0.1, losses=('labels', 'masks'),
                 class_block=None, tile_rows=None, alpha=0.25, gamma=2.0):
        self.num_classes = num_classes
        self.eos_coef = eos_coef
        self.losses = losses
        self.class_block = class_block
        self.tile_rows = tile_rows
        self.alpha = alpha
        self.gamma = gamma
        ew = jnp.ones((num_classes + 1,), jnp.float32)
        self.empty_weight = ew.at[-1].set(eos_coef)

    def forward(self, outputs, gt_masks):
        # TODO(synk): the Hungarian matcher, torch.unique-based target gathering,
        # distributed all_reduce of num_masks, and the 'res_masks'/'aux_outputs'
        # branches are data-dependent host logic with no static-shape Pallas
        # equivalent; replaced with identity matching (query i <-> class i) and
        # gt that contains every class. pred-mask resolution == gt resolution so
        # F.interpolate(mode='bilinear') is an exact identity.
        pred_logits = outputs['pred_logits']            # [B, Q, K]
        pred_masks = outputs['pred_masks']              # [B, Q, H, W]
        B, Q, K = pred_logits.shape
        C = self.num_classes
        H, W = gt_masks.shape[-2:]
        gt_masks = gt_masks.astype(jnp.int32)

        losses = {}

        if 'labels' in self.losses:
            cls_ids = jnp.arange(C, dtype=jnp.int32)
            target_classes = jnp.full((B, Q), C, dtype=jnp.int32)
            target_classes = target_classes.at[:, :C].set(cls_ids[None, :])
            losses['loss_ce'] = loss_labels(pred_logits, target_classes,
                                            self.empty_weight)

        if 'masks' in self.losses:
            focal, pt, p, t = mask_loss_partials_pallas(
                pred_masks, gt_masks, C, alpha=self.alpha, gamma=self.gamma,
                class_block=self.class_block, tile_rows=self.tile_rows)
            # num_masks = #(image, present-class) pairs, derived from the
            # kernel's own t-sums (no extra presence pass over gt in HBM).
            num_masks = jnp.maximum(jnp.sum((t > 0.0).astype(jnp.float32)), 1.0)
            losses['loss_mask'] = jnp.sum(focal / float(H * W)) / num_masks
            dice = 1.0 - (2.0 * pt + 1.0) / (p + t + 1.0)
            losses['loss_dice'] = jnp.sum(dice) / num_masks
        return losses


# ----------------------------------------------------------------------------
# Pure-JAX reference (same identity-matching semantics) for verification
# ----------------------------------------------------------------------------
def _reference(pred_logits, pred_masks, gt_masks, C, empty_weight,
               alpha=0.25, gamma=2.0):
    B, Q, K = pred_logits.shape
    H, W = gt_masks.shape[-2:]
    cls_ids = jnp.arange(C, dtype=jnp.int32)
    target_classes = jnp.full((B, Q), C, dtype=jnp.int32)
    target_classes = target_classes.at[:, :C].set(cls_ids[None, :])

    logp = jax.nn.log_softmax(pred_logits.astype(jnp.float32), axis=-1)
    nll = -jnp.take_along_axis(logp, target_classes[..., None], axis=-1)[..., 0]
    w = empty_weight[target_classes]
    loss_ce = jnp.sum(w * nll) / jnp.sum(w)

    labels4 = (gt_masks[:, None] == cls_ids[None, :, None, None]).astype(jnp.float32)
    num_masks = jnp.maximum(labels4.any(axis=(2, 3)).sum().astype(jnp.float32), 1.0)

    logits = pred_masks[:, :C].reshape(B * C, H * W).astype(jnp.float32)
    labels = labels4.reshape(B * C, H * W)
    prob = jax.nn.sigmoid(logits)
    ce = (jnp.maximum(logits, 0.0) - logits * labels
          + jnp.log1p(jnp.exp(-jnp.abs(logits))))
    p_t = prob * labels + (1.0 - prob) * (1.0 - labels)
    alpha_t = alpha * labels + (1.0 - alpha) * (1.0 - labels)
    loss = alpha_t * ce * (1.0 - p_t) ** gamma
    loss_mask = jnp.sum(jnp.mean(loss, axis=1)) / num_masks
    numer = 2.0 * jnp.sum(prob * labels, -1)
    denom = jnp.sum(prob, -1) + jnp.sum(labels, -1)
    loss_dice = jnp.sum(1.0 - (numer + 1.0) / (denom + 1.0)) / num_masks
    return loss_ce, loss_mask, loss_dice


if __name__ == "__main__":
    key = jax.random.PRNGKey(0)
    B, Q, C, H, W = 2, 8, 3, 16, 16     # batch, queries, classes, spatial
    K = C + 1

    k1, k2, k3 = jax.random.split(key, 3)
    pred_logits = jax.random.normal(k1, (B, Q, K), dtype=jnp.float32)
    pred_masks = jax.random.normal(k2, (B, Q, H, W), dtype=jnp.float32)
    gt_masks = jax.random.randint(k3, (B, H, W), 0, C).astype(jnp.int32)
    # guarantee every class appears in every image (identity-matcher assumption)
    gt_masks = gt_masks.at[:, 0, :C].set(jnp.arange(C, dtype=jnp.int32)[None, :])

    criterion = SetCriterionPallas(num_classes=C, eos_coef=0.1,
                                   losses=('labels', 'masks'))
    losses = criterion.forward(
        {'pred_logits': pred_logits, 'pred_masks': pred_masks}, gt_masks)
    jax.block_until_ready(losses)

    ref_ce, ref_mask, ref_dice = _reference(
        pred_logits, pred_masks, gt_masks, C, criterion.empty_weight)
    np.testing.assert_allclose(np.asarray(losses['loss_ce']),
                               np.asarray(ref_ce), rtol=1e-4, atol=1e-5)
    np.testing.assert_allclose(np.asarray(losses['loss_mask']),
                               np.asarray(ref_mask), rtol=1e-4, atol=1e-5)
    np.testing.assert_allclose(np.asarray(losses['loss_dice']),
                               np.asarray(ref_dice), rtol=1e-4, atol=1e-5)
    print("KERNEL_OK")
</pallas_src>

<mosaic_0001>
module attributes {stable_mosaic.version = 11 : i64} {
  func.func @_mask_loss_kernel(%arg0: i32, %arg1: i32, %arg2: i32, %arg3: memref<1x8x8x128xf32, #tpu.memory_space<vmem>>, %arg4: memref<1x8x128xi32, #tpu.memory_space<vmem>>, %arg5: memref<1x8x32x128xf32, #tpu.memory_space<vmem>>) attributes {dimension_semantics = [#tpu.dimension_semantics<parallel>, #tpu.dimension_semantics<parallel>, #tpu.dimension_semantics<arbitrary>], iteration_bounds = array<i64: 2, 1, 1>, scalar_prefetch = 0 : i64, scratch_operands = 0 : i64, tpu.core_type = #tpu.core_type<tc>, window_params = [{transform_indices = @transform_0, window_bounds = array<i64: 1, 8, 8, 128>}, {transform_indices = @transform_1, window_bounds = array<i64: 1, 8, 128>}, {transform_indices = @transform_2, window_bounds = array<i64: 1, 8, 32, 128>}]} {
    %c0_i32 = arith.constant 0 : i32
    %0 = arith.cmpi eq, %arg2, %c0_i32 : i32
    %1 = arith.extui %0 : i1 to i32
    %c0_i32_0 = arith.constant 0 : i32
    %2 = arith.cmpi ne, %1, %c0_i32_0 : i32
    scf.if %2 {
      %cst_50 = arith.constant 0.000000e+00 : f32
      %86 = vector.broadcast %cst_50 : f32 to vector<1x8x32x128xf32>
      %c0_51 = arith.constant 0 : index
      %c0_52 = arith.constant 0 : index
      %c0_53 = arith.constant 0 : index
      %c0_54 = arith.constant 0 : index
      %87 = vector.load %arg5[%c0_51, %c0_52, %c0_53, %c0_54] : memref<1x8x32x128xf32, #tpu.memory_space<vmem>>, vector<1x8x32x128xf32>
      tpu.vector_store %arg5[%c0_51, %c0_52, %c0_53, %c0_54], %86 {strides = array<i32>} : memref<1x8x32x128xf32, #tpu.memory_space<vmem>>, vector<1x8x32x128xf32>,
    } else {
    }
    %c8_i32 = arith.constant 8 : i32
    %3 = arith.muli %arg1, %c8_i32 : i32
    %c0 = arith.constant 0 : index
    %c0_1 = arith.constant 0 : index
    %c0_2 = arith.constant 0 : index
    %c0_3 = arith.constant 0 : index
    %4 = vector.load %arg3[%c0, %c0_1, %c0_2, %c0_3] : memref<1x8x8x128xf32, #tpu.memory_space<vmem>>, vector<1x8x8x128xf32>
    %5 = vector.shape_cast %4 : vector<1x8x8x128xf32> to vector<8x8x128xf32>
    %c0_4 = arith.constant 0 : index
    %c0_5 = arith.constant 0 : index
    %c0_6 = arith.constant 0 : index
    %6 = vector.load %arg4[%c0_4, %c0_5, %c0_6] : memref<1x8x128xi32, #tpu.memory_space<vmem>>, vector<1x8x128xi32>
    %7 = vector.shape_cast %6 : vector<1x8x128xi32> to vector<8x128xi32>
    %8 = tpu.iota {dimensions = array<i32: 0>} : vector<8x8x128xi32>
    %9 = vector.broadcast %3 : i32 to vector<8x8x128xi32>
    %10 = arith.addi %9, %8 : vector<8x8x128xi32>
    %11 = vector.shape_cast %7 : vector<8x128xi32> to vector<1x8x128xi32>
    %12 = vector.broadcast %11 : vector<1x8x128xi32> to vector<8x8x128xi32>
    %13 = arith.cmpi eq, %12, %10 : vector<8x8x128xi32>
    %14 = arith.extui %13 : vector<8x8x128xi1> to vector<8x8x128xi32>
    %15 = arith.sitofp %14 : vector<8x8x128xi32> to vector<8x8x128xf32>
    %16 = math.absf %5 : vector<8x8x128xf32>
    %cst = arith.constant 0.000000e+00 : f32
    %17 = vector.broadcast %cst : f32 to vector<8x8x128xf32>
    %18 = arith.subf %17, %16 : vector<8x8x128xf32>
    %19 = math.exp %18 : vector<8x8x128xf32>
    %cst_7 = arith.constant 1.000000e+00 : f32
    %20 = vector.broadcast %cst_7 : f32 to vector<8x8x128xf32>
    %21 = arith.addf %20, %19 : vector<8x8x128xf32>
    %cst_8 = arith.constant 1.000000e+00 : f32
    %22 = vector.broadcast %cst_8 : f32 to vector<8x8x128xf32>
    %23 = arith.divf %22, %21 : vector<8x8x128xf32>
    %cst_9 = arith.constant 0.000000e+00 : f32
    %24 = vector.broadcast %cst_9 : f32 to vector<8x8x128xf32>
    %25 = arith.cmpf oge, %5, %24 : vector<8x8x128xf32>
    %26 = arith.mulf %19, %23 : vector<8x8x128xf32>
    %27 = arith.select %25, %23, %26 : vector<8x8x128xi1>, vector<8x8x128xf32>
    %cst_10 = arith.constant 0.000000e+00 : f32
    %28 = vector.broadcast %cst_10 : f32 to vector<8x8x128xf32>
    %29 = arith.maximumf %5, %28 : vector<8x8x128xf32>
    %30 = arith.mulf %5, %15 : vector<8x8x128xf32>
    %31 = arith.subf %29, %30 : vector<8x8x128xf32>
    %32 = math.log1p %19 : vector<8x8x128xf32>
    %33 = arith.addf %31, %32 : vector<8x8x128xf32>
    %34 = arith.mulf %27, %15 : vector<8x8x128xf32>
    %cst_11 = arith.constant 1.000000e+00 : f32
    %35 = vector.broadcast %cst_11 : f32 to vector<8x8x128xf32>
    %36 = arith.subf %35, %27 : vector<8x8x128xf32>
    %cst_12 = arith.constant 1.000000e+00 : f32
    %37 = vector.broadcast %cst_12 : f32 to vector<8x8x128xf32>
    %38 = arith.subf %37, %15 : vector<8x8x128xf32>
    %39 = arith.mulf %36, %38 : vector<8x8x128xf32>
    %40 = arith.addf %34, %39 : vector<8x8x128xf32>
    %cst_13 = arith.constant 1.000000e+00 : f32
    %41 = vector.broadcast %cst_13 : f32 to vector<8x8x128xf32>
    %42 = arith.subf %41, %40 : vector<8x8x128xf32>
    %43 = arith.mulf %42, %42 : vector<8x8x128xf32>
    %44 = arith.mulf %33, %43 : vector<8x8x128xf32>
    %cst_14 = arith.constant 2.500000e-01 : f32
    %45 = vector.broadcast %cst_14 : f32 to vector<8x8x128xf32>
    %46 = arith.mulf %45, %15 : vector<8x8x128xf32>
    %cst_15 = arith.constant 1.000000e+00 : f32
    %47 = vector.broadcast %cst_15 : f32 to vector<8x8x128xf32>
    %48 = arith.subf %47, %15 : vector<8x8x128xf32>
    %cst_16 = arith.constant 7.500000e-01 : f32
    %49 = vector.broadcast %cst_16 : f32 to vector<8x8x128xf32>
    %50 = arith.mulf %49, %48 : vector<8x8x128xf32>
    %51 = arith.addf %46, %50 : vector<8x8x128xf32>
    %52 = arith.mulf %51, %44 : vector<8x8x128xf32>
    %c0_17 = arith.constant 0 : index
    %c0_18 = arith.constant 0 : index
    %c0_19 = arith.constant 0 : index
    %c0_20 = arith.constant 0 : index
    %53 = vector.load %arg5[%c0_17, %c0_18, %c0_19, %c0_20] : memref<1x8x32x128xf32, #tpu.memory_space<vmem>>, vector<1x8x8x128xf32>
    %54 = vector.shape_cast %53 : vector<1x8x8x128xf32> to vector<8x8x128xf32>
    %55 = vector.shape_cast %52 : vector<8x8x128xf32> to vector<8x1x8x128xf32>
    %cst_21 = arith.constant dense<0.000000e+00> : vector<8x8x128xf32>
    %56 = vector.multi_reduction <add>, %55, %cst_21 [1] : vector<8x1x8x128xf32> to vector<8x8x128xf32>
    %57 = arith.addf %54, %56 : vector<8x8x128xf32>
    %c0_22 = arith.constant 0 : index
    %c0_23 = arith.constant 0 : index
    %c0_24 = arith.constant 0 : index
    %c0_25 = arith.constant 0 : index
    %58 = vector.load %arg5[%c0_22, %c0_23, %c0_24, %c0_25] : memref<1x8x32x128xf32, #tpu.memory_space<vmem>>, vector<1x8x8x128xf32>
    %59 = vector.shape_cast %58 : vector<1x8x8x128xf32> to vector<8x8x128xf32>
    %60 = vector.shape_cast %57 : vector<8x8x128xf32> to vector<1x8x8x128xf32>
    tpu.vector_store %arg5[%c0_22, %c0_23, %c0_24, %c0_25], %60 {strides = array<i32>} : memref<1x8x32x128xf32, #tpu.memory_space<vmem>>, vector<1x8x8x128xf32>,
    %c0_26 = arith.constant 0 : index
    %c0_27 = arith.constant 0 : index
    %c8 = arith.constant 8 : index
    %c0_28 = arith.constant 0 : index
    %61 = vector.load %arg5[%c0_26, %c0_27, %c8, %c0_28] : memref<1x8x32x128xf32, #tpu.memory_space<vmem>>, vector<1x8x8x128xf32>
    %62 = vector.shape_cast %61 : vector<1x8x8x128xf32> to vector<8x8x128xf32>
    %63 = arith.mulf %27, %15 : vector<8x8x128xf32>
    %64 = vector.shape_cast %63 : vector<8x8x128xf32> to vector<8x1x8x128xf32>
    %cst_29 = arith.constant dense<0.000000e+00> : vector<8x8x128xf32>
    %65 = vector.multi_reduction <add>, %64, %cst_29 [1] : vector<8x1x8x128xf32> to vector<8x8x128xf32>
    %66 = arith.addf %62, %65 : vector<8x8x128xf32>
    %c0_30 = arith.constant 0 : index
    %c0_31 = arith.constant 0 : index
    %c8_32 = arith.constant 8 : index
    %c0_33 = arith.constant 0 : index
    %67 = vector.load %arg5[%c0_30, %c0_31, %c8_32, %c0_33] : memref<1x8x32x128xf32, #tpu.memory_space<vmem>>, vector<1x8x8x128xf32>
    %68 = vector.shape_cast %67 : vector<1x8x8x128xf32> to vector<8x8x128xf32>
    %69 = vector.shape_cast %66 : vector<8x8x128xf32> to vector<1x8x8x128xf32>
    tpu.vector_store %arg5[%c0_30, %c0_31, %c8_32, %c0_33], %69 {strides = array<i32>} : memref<1x8x32x128xf32, #tpu.memory_space<vmem>>, vector<1x8x8x128xf32>,
    %c0_34 = arith.constant 0 : index
    %c0_35 = arith.constant 0 : index
    %c16 = arith.constant 16 : index
    %c0_36 = arith.constant 0 : index
    %70 = vector.load %arg5[%c0_34, %c0_35, %c16, %c0_36] : memref<1x8x32x128xf32, #tpu.memory_space<vmem>>, vector<1x8x8x128xf32>
    %71 = vector.shape_cast %70 : vector<1x8x8x128xf32> to vector<8x8x128xf32>
    %72 = vector.shape_cast %27 : vector<8x8x128xf32> to vector<8x1x8x128xf32>
    %cst_37 = arith.constant dense<0.000000e+00> : vector<8x8x128xf32>
    %73 = vector.multi_reduction <add>, %72, %cst_37 [1] : vector<8x1x8x128xf32> to vector<8x8x128xf32>
    %74 = arith.addf %71, %73 : vector<8x8x128xf32>
    %c0_38 = arith.constant 0 : index
    %c0_39 = arith.constant 0 : index
    %c16_40 = arith.constant 16 : index
    %c0_41 = arith.constant 0 : index
    %75 = vector.load %arg5[%c0_38, %c0_39, %c16_40, %c0_41] : memref<1x8x32x128xf32, #tpu.memory_space<vmem>>, vector<1x8x8x128xf32>
    %76 = vector.shape_cast %75 : vector<1x8x8x128xf32> to vector<8x8x128xf32>
    %77 = vector.shape_cast %74 : vector<8x8x128xf32> to vector<1x8x8x128xf32>
    tpu.vector_store %arg5[%c0_38, %c0_39, %c16_40, %c0_41], %77 {strides = array<i32>} : memref<1x8x32x128xf32, #tpu.memory_space<vmem>>, vector<1x8x8x128xf32>,
    %c0_42 = arith.constant 0 : index
    %c0_43 = arith.constant 0 : index
    %c24 = arith.constant 24 : index
    %c0_44 = arith.constant 0 : index
    %78 = vector.load %arg5[%c0_42, %c0_43, %c24, %c0_44] : memref<1x8x32x128xf32, #tpu.memory_space<vmem>>, vector<1x8x8x128xf32>
    %79 = vector.shape_cast %78 : vector<1x8x8x128xf32> to vector<8x8x128xf32>
    %80 = vector.shape_cast %15 : vector<8x8x128xf32> to vector<8x1x8x128xf32>
    %cst_45 = arith.constant dense<0.000000e+00> : vector<8x8x128xf32>
    %81 = vector.multi_reduction <add>, %80, %cst_45 [1] : vector<8x1x8x128xf32> to vector<8x8x128xf32>
    %82 = arith.addf %79, %81 : vector<8x8x128xf32>
    %c0_46 = arith.constant 0 : index
    %c0_47 = arith.constant 0 : index
    %c24_48 = arith.constant 24 : index
    %c0_49 = arith.constant 0 : index
    %83 = vector.load %arg5[%c0_46, %c0_47, %c24_48, %c0_49] : memref<1x8x32x128xf32, #tpu.memory_space<vmem>>, vector<1x8x8x128xf32>
    %84 = vector.shape_cast %83 : vector<1x8x8x128xf32> to vector<8x8x128xf32>
    %85 = vector.shape_cast %82 : vector<8x8x128xf32> to vector<1x8x8x128xf32>
    tpu.vector_store %arg5[%c0_46, %c0_47, %c24_48, %c0_49], %85 {strides = array<i32>} : memref<1x8x32x128xf32, #tpu.memory_space<vmem>>, vector<1x8x8x128xf32>,
    return
  }
  func.func @transform_0(%arg0: i32, %arg1: i32, %arg2: i32) -> (i32, i32, i32, i32) {
    %c0_i32 = arith.constant 0 : i32
    %c0_i32_0 = arith.constant 0 : i32
    return %arg0, %arg1, %arg2, %c0_i32 : i32, i32, i32, i32
  }
  func.func @transform_1(%arg0: i32, %arg1: i32, %arg2: i32) -> (i32, i32, i32) {
    %c0_i32 = arith.constant 0 : i32
    %c0_i32_0 = arith.constant 0 : i32
    return %arg0, %arg2, %c0_i32 : i32, i32, i32
  }
  func.func @transform_2(%arg0: i32, %arg1: i32, %arg2: i32) -> (i32, i32, i32, i32) {
    %c0_i32 = arith.constant 0 : i32
    %c0_i32_0 = arith.constant 0 : i32
    %c0_i32_1 = arith.constant 0 : i32
    return %arg0, %arg1, %c0_i32, %c0_i32_0 : i32, i32, i32, i32
  }
}

</mosaic_0001>

<llo_original>
// kernel: tpu_custom_call.1
$region0: #{tpu_custom_call.1}
  #allocation0 [shape = 'u32[]', space=smem, size = 0x4, offset = 0x4, fixed_abs, tag = 'smem constant byte address 0x4 - core index']
  #allocation1 [shape = 'u32[144,128]{1,0:T(1,128)}', space=vmem, size = 0x12000, scoped, tag = 'internal scratch']
  %s0 = inlined_call_operand.hbm [shape: f32[2,8,8,128], index: 0, kind: input, shape index: {}]
  %s1 = inlined_call_operand.hbm [shape: s32[2,8,128], index: 1, kind: input, shape index: {}]
  %s2 = inlined_call_operand.hbm [shape: f32[2,8,32,128], index: 2, kind: output, shape index: {}]
  %s3 = sld [smem:[#allocation0]]
  $region53: #{tpu_custom_call.1} parent=0
    _
  %s5 = ssub.s32 1, %s3
  %s6 = scalar_select 0, %s5, %s3
  $region1: #{tpu_custom_call.1} parent=0
    #allocation2 [shape = 'u8[65536]{0}', space=vmem, size = 0x10000, scoped, tag = 'input window, operand 0']
    #allocation3 [shape = 's32[2]{0}', space=sflag, size = 0x8, scoped, tag = 'scoped memory for tpu_custom_call.1']
    #allocation4 [shape = 's32[2]{0}', space=sflag, size = 0x8, scoped, tag = 'scoped memory for tpu_custom_call.1']
    #allocation5 [shape = 'u8[8192]{0}', space=vmem, size = 0x2000, scoped, tag = 'input window, operand 1']
    #allocation6 [shape = 's32[2]{0}', space=sflag, size = 0x8, scoped, tag = 'scoped memory for tpu_custom_call.1']
    #allocation7 [shape = 'u8[262144]{0}', space=vmem, size = 0x40000, scoped, tag = 'output window, operand 0']
    %7 = vsyncpa [#allocation3], 0
    %s8 = scalar_lea.sflag [#allocation3], 1
    %9 = vsyncpa %s8, 0
    %10 = vsyncpa [#allocation6], 0
    %s11 = scalar_lea.sflag [#allocation6], 1
    %12 = vsyncpa %s11, 0
    %13 = vsyncpa [#allocation4], 0
    %s14 = scalar_lea.sflag [#allocation4], 1
    %15 = vsyncpa %s14, 0
    loop: start=0, step=1, limit=4
    $region2: #{tpu_custom_call.1} parent=1 // loop_pre_header
      _
    $region3: #{tpu_custom_call.1} parent=1 // loop_header
      %s17 = sphi 0, %s21
      %p18 = scmp.ge.s32.totalorder %s17, 4
      %s24 = sphi 0, %s43
      %s25 = sphi 0, %s39
      %s26 = sphi 0, %s35
      %s27 = sphi 0, %s24
      %s28 = sphi 0, %s25
      %s29 = sphi 0, %s26
      %s30 = sphi 0, %s27
      %s31 = sphi 0, %s28
      %s32 = sphi 0, %s29
      %s50 = sphi 0, %s52
      %s53 = sphi 0, %s50
      %s54 = sphi 0, %s53
      %s70 = sphi 0, %s54
      %s78 = sphi 0, %s80
      %s81 = sphi 0, %s78
      %s82 = sphi 0, %s81
      %s98 = sphi 0, %s82
      %s106 = sphi 0, %s108
      %s109 = sphi 0, %s106
      %s110 = sphi 0, %s109
      %s126 = sphi 0, %s110
    $region4: #{tpu_custom_call.1} parent=1 // loop_header_branch
      %20 = sbr.rel (%p18) target = $region8
    $region5: #{tpu_custom_call.1} parent=1 // loop_body
      %s22 = ssub.s32 %s17, 1
      %s23 = ssub.s32 %s17, 2
      %s33 = sadd.s32 1, %s26
      %p34 = scmp.ge.s32.totalorder %s33, 1
      %s35 = scalar_select %p34, 0, %s33
      %s36 = sadd.s32 1, %s25
      %s37 = scalar_select %p34, %s36, %s25
      %p38 = scmp.ge.s32.totalorder %s37, 1
      %s39 = scalar_select %p38, 0, %s37
      %s40 = sadd.s32 1, %s24
      %s41 = scalar_select %p38, %s40, %s24
      %p42 = scmp.ge.s32.totalorder %s41, 2
      %s43 = scalar_select %p42, 0, %s41
      %s44 = ssub.s32 %s24, %s43
      %s45 = ssub.s32 %s25, %s39
      %s46 = sor.u32 %s44, %s45
      %s47 = ssub.s32 %s26, %s35
      %s48 = sor.u32 %s46, %s47
      %p49 = scmp.eq.s32.totalorder %s48, 0
      %s51 = sadd.s32 %s50, 1
      %s52 = scalar_select %p49, %s50, %s51
      %p55 = pneg %p49
      %p56 = scmp.eq.s32.totalorder %s17, 1
      %p57 = por %p55, %p56
      %p58 = scmp.ne.s32.totalorder %s50, %s53
      %p59 = scmp.eq.s32.totalorder %s17, 0
      %p60 = por %p58, %p59
      %p61 = scmp.ne.s32.totalorder %s50, %s53
      %p62 = scmp.eq.s32.totalorder %s22, 1
      %p63 = por %p61, %p62
      %p64 = scmp.ne.s32.totalorder %s53, %s54
      %p65 = scmp.eq.s32.totalorder %s22, 0
      %p66 = por %p64, %p65
      %p67 = scmp.ne.s32.totalorder %s53, %s54
      %p68 = scmp.eq.s32.totalorder %s23, 1
      %p69 = por %p67, %p68
      %p71 = scmp.ne.s32.totalorder %s54, %s70
      %p72 = scmp.eq.s32.totalorder %s23, 0
      %p73 = por %p71, %p72
      %s74 = ssub.s32 %s24, %s43
      %s75 = ssub.s32 %s26, %s35
      %s76 = sor.u32 %s74, %s75
      %p77 = scmp.eq.s32.totalorder %s76, 0
      %s79 = sadd.s32 %s78, 1
      %s80 = scalar_select %p77, %s78, %s79
      %p83 = pneg %p77
      %p84 = scmp.eq.s32.totalorder %s17, 1
      %p85 = por %p83, %p84
      %p86 = scmp.ne.s32.totalorder %s78, %s81
      %p87 = scmp.eq.s32.totalorder %s17, 0
      %p88 = por %p86, %p87
      %p89 = scmp.ne.s32.totalorder %s78, %s81
      %p90 = scmp.eq.s32.totalorder %s22, 1
      %p91 = por %p89, %p90
      %p92 = scmp.ne.s32.totalorder %s81, %s82
      %p93 = scmp.eq.s32.totalorder %s22, 0
      %p94 = por %p92, %p93
      %p95 = scmp.ne.s32.totalorder %s81, %s82
      %p96 = scmp.eq.s32.totalorder %s23, 1
      %p97 = por %p95, %p96
      %p99 = scmp.ne.s32.totalorder %s82, %s98
      %p100 = scmp.eq.s32.totalorder %s23, 0
      %p101 = por %p99, %p100
      %s102 = ssub.s32 %s24, %s43
      %s103 = ssub.s32 %s25, %s39
      %s104 = sor.u32 %s102, %s103
      %p105 = scmp.eq.s32.totalorder %s104, 0
      %s107 = sadd.s32 %s106, 1
      %s108 = scalar_select %p105, %s106, %s107
      %p111 = pneg %p105
      %p112 = scmp.eq.s32.totalorder %s17, 1
      %p113 = por %p111, %p112
      %p114 = scmp.ne.s32.totalorder %s106, %s109
      %p115 = scmp.eq.s32.totalorder %s17, 0
      %p116 = por %p114, %p115
      %p117 = scmp.ne.s32.totalorder %s106, %s109
      %p118 = scmp.eq.s32.totalorder %s22, 1
      %p119 = por %p117, %p118
      %p120 = scmp.ne.s32.totalorder %s109, %s110
      %p121 = scmp.eq.s32.totalorder %s22, 0
      %p122 = por %p120, %p121
      %p123 = scmp.ne.s32.totalorder %s109, %s110
      %p124 = scmp.eq.s32.totalorder %s23, 1
      %p125 = por %p123, %p124
      %p127 = scmp.ne.s32.totalorder %s110, %s126
      %p128 = scmp.eq.s32.totalorder %s23, 0
      %p129 = por %p127, %p128
      %p130 = scmp.le.s32.totalorder 1, %s17
      %p131 = scmp.lt.s32.totalorder %s17, 3
      %p132 = pnand %p130, %p131
      %p133 = pneg %p132
      // Predicated region
      $region9: #{tpu_custom_call.1} parent=5 // pred_check
        _
      $region10: #{tpu_custom_call.1} parent=5 // pred_check_branch
        %135 = sbr.rel (%p132) target = $region12
      $region11: #{tpu_custom_call.1} parent=5 // pred_region
        %s136 = ssub.s32 %s17, 1
      $region12: #{tpu_custom_call.1} parent=5 // pred_fallthru
        _
      %p137 = scmp.lt.s32.totalorder %s17, 2
      // Predicated region
      $region13: #{tpu_custom_call.1} parent=5 // pred_check
        %p138 = pneg %p137
      $region14: #{tpu_custom_call.1} parent=5 // pred_check_branch
        %140 = sbr.rel (%p138) target = $region16
      $region15: #{tpu_custom_call.1} parent=5 // pred_region
        // Predicated region
        $region17: #{tpu_custom_call.1} parent=15 // pred_check
          %p141 = pneg %p60
        $region18: #{tpu_custom_call.1} parent=15 // pred_check_branch
          %143 = sbr.rel (%p141) target = $region20
        $region19: #{tpu_custom_call.1} parent=15 // pred_region
          %s144 = sand.u32 %s50, 1
          %s145 = scalar_lea.sflag [#allocation3], %s144
          %s146 = sand.u32 %s50, 1
          %s147 = smul.addr %s146, 64
          %s148 = scalar_lea.vmem [#allocation2], %s147
          %s149 = smul.u32 8, %s25
          %s151 = ssub.s32 1024, 1024
          %152 = vsyncadd %s145, %s151
          %s153 = sadd.s32 %s26, %s149
          %s154 = smul.addr %s24, 8
          %s155 = sadd.s32 %s153, %s154
          %s156 = smul.addr %s155, 128
          %s157 = scalar_lea.hbm %s0, %s156
          %s158 = sshll.u32 %s148, 4
          %s159 = int_to_ptr.vmem [resolvable:$true] %s158
          %164 = dma.hbm_to_vmem [thread:$0]  %s157, 1024, %s159, %s145, 128, 128, 8
        $region20: #{tpu_custom_call.1} parent=15 // pred_fallthru
          _
        // Predicated region
        $region21: #{tpu_custom_call.1} parent=15 // pred_check
          %p165 = pneg %p88
        $region22: #{tpu_custom_call.1} parent=15 // pred_check_branch
          %167 = sbr.rel (%p165) target = $region24
        $region23: #{tpu_custom_call.1} parent=15 // pred_region
          %s168 = sand.u32 %s78, 1
          %s169 = scalar_lea.sflag [#allocation6], %s168
          %s170 = sand.u32 %s78, 1
          %s171 = smul.addr %s170, 8
          %s172 = scalar_lea.vmem [#allocation5], %s171
          %s174 = ssub.s32 128, 128
          %175 = vsyncadd %s169, %s174
          %s176 = sadd.s32 %s26, %s24
          %s177 = smul.addr %s176, 128
          %s178 = scalar_lea.hbm %s1, %s177
          %s180 = sshll.u32 %s172, 4
          %s181 = int_to_ptr.vmem [resolvable:$true] %s180
          %183 = dma.hbm_to_vmem [thread:$0]  %s178, 128, %s181, %s169
        $region24: #{tpu_custom_call.1} parent=15 // pred_fallthru
          _
      $region16: #{tpu_custom_call.1} parent=5 // pred_fallthru
        _
      %p184 = scmp.le.s32.totalorder 1, %s17
      %p185 = scmp.lt.s32.totalorder %s17, 3
      %p186 = pnand %p184, %p185
      %p187 = pneg %p186
      // Predicated region
      $region25: #{tpu_custom_call.1} parent=5 // pred_check
        _
      $region26: #{tpu_custom_call.1} parent=5 // pred_check_branch
        %189 = sbr.rel (%p186) target = $region28
      $region27: #{tpu_custom_call.1} parent=5 // pred_region
        %s190 = ssub.s32 %s17, 1
        %s191 = sand.u32 %s53, 1
        %s192 = scalar_lea.sflag [#allocation3], %s191
        %s193 = sand.u32 %s53, 1
        %s194 = smul.addr %s193, 64
        %s195 = scalar_lea.vmem [#allocation2], %s194
        // Predicated region
        $region29: #{tpu_custom_call.1} parent=27 // pred_check
          %p196 = pneg %p66
        $region30: #{tpu_custom_call.1} parent=27 // pred_check_branch
          %198 = sbr.rel (%p196) target = $region32
        $region31: #{tpu_custom_call.1} parent=27 // pred_region
          %199 = dma.done %s192, 1024
        $region32: #{tpu_custom_call.1} parent=27 // pred_fallthru
          _
        %s200 = sand.u32 %s81, 1
        %s201 = scalar_lea.sflag [#allocation6], %s200
        %s202 = sand.u32 %s81, 1
        %s203 = smul.addr %s202, 8
        %s204 = scalar_lea.vmem [#allocation5], %s203
        // Predicated region
        $region33: #{tpu_custom_call.1} parent=27 // pred_check
          %p205 = pneg %p94
        $region34: #{tpu_custom_call.1} parent=27 // pred_check_branch
          %207 = sbr.rel (%p205) target = $region36
        $region35: #{tpu_custom_call.1} parent=27 // pred_region
          %208 = dma.done %s201, 128
        $region36: #{tpu_custom_call.1} parent=27 // pred_fallthru
          _
        %s209 = sand.u32 %s53, 1
        %s210 = scalar_lea.sflag [#allocation3], %s209
        %s211 = sand.u32 %s53, 1
        %s212 = smul.addr %s211, 64
        %s213 = scalar_lea.vmem [#allocation2], %s212
        %p214 = pneg %p66
        %p215 = pneg %p63
        %s216 = sand.u32 %s81, 1
        %s217 = scalar_lea.sflag [#allocation6], %s216
        %s218 = sand.u32 %s81, 1
        %s219 = smul.addr %s218, 8
        %s220 = scalar_lea.vmem [#allocation5], %s219
        %p221 = pneg %p94
        %p222 = pneg %p91
        %p223 = pneg %p122
        %p224 = pneg %p119
        %s225 = sand.u32 %s109, 1
        %s226 = scalar_lea.sflag [#allocation4], %s225
        %s227 = sand.u32 %s109, 1
        %s228 = smul.addr %s227, 256
        %s229 = scalar_lea.vmem [#allocation7], %s228
        %s230 = smul.u32 8, %s28
        %s231 = smul.u32 8, %s28
        %p232 = scmp.eq.s32.totalorder %s29, 0
        // Predicated region
        $region37: #{tpu_custom_call.1} parent=27 // pred_check
          %p233 = pneg %p232
        $region38: #{tpu_custom_call.1} parent=27 // pred_check_branch
          %235 = sbr.rel (%p233) target = $region40
        $region39: #{tpu_custom_call.1} parent=27 // pred_region
          %236 = vst [vmem:[%s229] sm:$0xff] 0.0
          %237 = vst [vmem:[%s229 + $0x8] sm:$0xff] 0.0
          %238 = vst [vmem:[%s229 + $0x10] sm:$0xff] 0.0
          %239 = vst [vmem:[%s229 + $0x18] sm:$0xff] 0.0
          %240 = vst [vmem:[%s229 + $0x20] sm:$0xff] 0.0
          %241 = vst [vmem:[%s229 + $0x28] sm:$0xff] 0.0
          %242 = vst [vmem:[%s229 + $0x30] sm:$0xff] 0.0
          %243 = vst [vmem:[%s229 + $0x38] sm:$0xff] 0.0
          %244 = vst [vmem:[%s229 + $0x40] sm:$0xff] 0.0
          %245 = vst [vmem:[%s229 + $0x48] sm:$0xff] 0.0
          %246 = vst [vmem:[%s229 + $0x50] sm:$0xff] 0.0
          %247 = vst [vmem:[%s229 + $0x58] sm:$0xff] 0.0
          %248 = vst [vmem:[%s229 + $0x60] sm:$0xff] 0.0
          %249 = vst [vmem:[%s229 + $0x68] sm:$0xff] 0.0
          %250 = vst [vmem:[%s229 + $0x70] sm:$0xff] 0.0
          %251 = vst [vmem:[%s229 + $0x78] sm:$0xff] 0.0
          %252 = vst [vmem:[%s229 + $0x80] sm:$0xff] 0.0
          %253 = vst [vmem:[%s229 + $0x88] sm:$0xff] 0.0
          %254 = vst [vmem:[%s229 + $0x90] sm:$0xff] 0.0
          %255 = vst [vmem:[%s229 + $0x98] sm:$0xff] 0.0
          %256 = vst [vmem:[%s229 + $0xa0] sm:$0xff] 0.0
          %257 = vst [vmem:[%s229 + $0xa8] sm:$0xff] 0.0
          %258 = vst [vmem:[%s229 + $0xb0] sm:$0xff] 0.0
          %259 = vst [vmem:[%s229 + $0xb8] sm:$0xff] 0.0
          %260 = vst [vmem:[%s229 + $0xc0] sm:$0xff] 0.0
          %261 = vst [vmem:[%s229 + $0xc8] sm:$0xff] 0.0
          %262 = vst [vmem:[%s229 + $0xd0] sm:$0xff] 0.0
          %263 = vst [vmem:[%s229 + $0xd8] sm:$0xff] 0.0
          %264 = vst [vmem:[%s229 + $0xe0] sm:$0xff] 0.0
          %265 = vst [vmem:[%s229 + $0xe8] sm:$0xff] 0.0
          %266 = vst [vmem:[%s229 + $0xf0] sm:$0xff] 0.0
          %267 = vst [vmem:[%s229 + $0xf8] sm:$0xff] 0.0
        $region40: #{tpu_custom_call.1} parent=27 // pred_fallthru
          _
        %s268 = smul.u32 %s28, 8
        %v269 = vld [vmem:[%s195] sm:$0xff]
        %v270 = vld [vmem:[%s195 + $0x8] sm:$0xff]
        %v271 = vld [vmem:[%s195 + $0x10] sm:$0xff]
        %v272 = vld [vmem:[%s195 + $0x18] sm:$0xff]
        %v273 = vld [vmem:[%s195 + $0x20] sm:$0xff]
        %v274 = vld [vmem:[%s195 + $0x28] sm:$0xff]
        %v275 = vld [vmem:[%s195 + $0x30] sm:$0xff]
        %v276 = vld [vmem:[%s195 + $0x38] sm:$0xff]
        %v277 = vld [vmem:[%s204] sm:$0xff]
        %v278 = vstv %s268
        %v279 = vadd.s32 %v278, 1
        %v280 = vadd.s32 %v278, 2
        %v281 = vadd.s32 %v278, 3
        %v282 = vadd.s32 %v278, 4
        %v283 = vadd.s32 %v278, 5
        %v284 = vadd.s32 %v278, 6
        %v285 = vadd.s32 %v278, 7
        %vm286 = vcmp.eq.s32.totalorder %v277, %v278
        %vm287 = vcmp.eq.s32.totalorder %v277, %v279
        %vm288 = vcmp.eq.s32.totalorder %v277, %v280
        %vm289 = vcmp.eq.s32.totalorder %v277, %v281
        %vm290 = vcmp.eq.s32.totalorder %v277, %v282
        %vm291 = vcmp.eq.s32.totalorder %v277, %v283
        %vm292 = vcmp.eq.s32.totalorder %v277, %v284
        %vm293 = vcmp.eq.s32.totalorder %v277, %v285
        %v294 = vsel %vm286, 1, 0
        %v295 = vsel %vm287, 1, 0
        %v296 = vsel %vm288, 1, 0
        %v297 = vsel %vm289, 1, 0
        %v298 = vsel %vm290, 1, 0
        %v299 = vsel %vm291, 1, 0
        %v300 = vsel %vm292, 1, 0
        %v301 = vsel %vm293, 1, 0
        %v302 = vcvt.s32.f32 %v294
        %v303 = vcvt.s32.f32 %v295
        %v304 = vcvt.s32.f32 %v296
        %v305 = vcvt.s32.f32 %v297
        %v306 = vcvt.s32.f32 %v298
        %v307 = vcvt.s32.f32 %v299
        %v308 = vcvt.s32.f32 %v300
        %v309 = vcvt.s32.f32 %v301
        %v310 = vand.u32 2147483647, %v269
        %v311 = vand.u32 2147483647, %v270
        %v312 = vand.u32 2147483647, %v271
        %v313 = vand.u32 2147483647, %v272
        %v314 = vand.u32 2147483647, %v273
        %v315 = vand.u32 2147483647, %v274
        %v316 = vand.u32 2147483647, %v275
        %v317 = vand.u32 2147483647, %v276
        %v318 = vsub.f32 0.0, %v310
        %v319 = vsub.f32 0.0, %v311
        %v320 = vsub.f32 0.0, %v312
        %v321 = vsub.f32 0.0, %v313
        %v322 = vsub.f32 0.0, %v314
        %v323 = vsub.f32 0.0, %v315
        %v324 = vsub.f32 0.0, %v316
        %v325 = vsub.f32 0.0, %v317
        %v326 = vmul.f32 %v318, 1.442695
        %v327 = vpow.pop %v326
        %v328 = vmul.f32 %v319, 1.442695
        %v329 = vpow.pop %v328
        %v330 = vmul.f32 %v320, 1.442695
        %v331 = vpow.pop %v330
        %v332 = vmul.f32 %v321, 1.442695
        %v333 = vpow.pop %v332
        %v334 = vmul.f32 %v322, 1.442695
        %v335 = vpow.pop %v334
        %v336 = vmul.f32 %v323, 1.442695
        %v337 = vpow.pop %v336
        %v338 = vmul.f32 %v324, 1.442695
        %v339 = vpow.pop %v338
        %v340 = vmul.f32 %v325, 1.442695
        %v341 = vpow.pop %v340
        %v342 = vadd.f32 %v327, 1.0
        %v343 = vadd.f32 %v329, 1.0
        %v344 = vadd.f32 %v331, 1.0
        %v345 = vadd.f32 %v333, 1.0
        %v346 = vadd.f32 %v335, 1.0
        %v347 = vadd.f32 %v337, 1.0
        %v348 = vadd.f32 %v339, 1.0
        %v349 = vadd.f32 %v341, 1.0
        %v350 = vrcp.pop %v342
        %v351 = vmul.f32 1.0, %v350
        %v352 = vrcp.pop %v343
        %v353 = vmul.f32 1.0, %v352
        %v354 = vrcp.pop %v344
        %v355 = vmul.f32 1.0, %v354
        %v356 = vrcp.pop %v345
        %v357 = vmul.f32 1.0, %v356
        %v358 = vrcp.pop %v346
        %v359 = vmul.f32 1.0, %v358
        %v360 = vrcp.pop %v347
        %v361 = vmul.f32 1.0, %v360
        %v362 = vrcp.pop %v348
        %v363 = vmul.f32 1.0, %v362
        %v364 = vrcp.pop %v349
        %v365 = vmul.f32 1.0, %v364
        %vm366 = vcmp.ge.f32.partialorder %v269, 0.0
        %vm367 = vcmp.ge.f32.partialorder %v270, 0.0
        %vm368 = vcmp.ge.f32.partialorder %v271, 0.0
        %vm369 = vcmp.ge.f32.partialorder %v272, 0.0
        %vm370 = vcmp.ge.f32.partialorder %v273, 0.0
        %vm371 = vcmp.ge.f32.partialorder %v274, 0.0
        %vm372 = vcmp.ge.f32.partialorder %v275, 0.0
        %vm373 = vcmp.ge.f32.partialorder %v276, 0.0
        %v374 = vmul.f32 %v327, %v351
        %v375 = vmul.f32 %v329, %v353
        %v376 = vmul.f32 %v331, %v355
        %v377 = vmul.f32 %v333, %v357
        %v378 = vmul.f32 %v335, %v359
        %v379 = vmul.f32 %v337, %v361
        %v380 = vmul.f32 %v339, %v363
        %v381 = vmul.f32 %v341, %v365
        %v382 = vsel %vm366, %v351, %v374
        %v383 = vsel %vm367, %v353, %v375
        %v384 = vsel %vm368, %v355, %v376
        %v385 = vsel %vm369, %v357, %v377
        %v386 = vsel %vm370, %v359, %v378
        %v387 = vsel %vm371, %v361, %v379
        %v388 = vsel %vm372, %v363, %v380
        %v389 = vsel %vm373, %v365, %v381
        %v390 = vmax.f32 %v269, 0.0
        %v391 = vmax.f32 %v270, 0.0
        %v392 = vmax.f32 %v271, 0.0
        %v393 = vmax.f32 %v272, 0.0
        %v394 = vmax.f32 %v273, 0.0
        %v395 = vmax.f32 %v274, 0.0
        %v396 = vmax.f32 %v275, 0.0
        %v397 = vmax.f32 %v276, 0.0
        %v398 = vmul.f32 %v269, %v302
        %v399 = vmul.f32 %v270, %v303
        %v400 = vmul.f32 %v271, %v304
        %v401 = vmul.f32 %v272, %v305
        %v402 = vmul.f32 %v273, %v306
        %v403 = vmul.f32 %v274, %v307
        %v404 = vmul.f32 %v275, %v308
        %v405 = vmul.f32 %v276, %v309
        %v406 = vsub.f32 %v390, %v398
        %v407 = vsub.f32 %v391, %v399
        %v408 = vsub.f32 %v392, %v400
        %v409 = vsub.f32 %v393, %v401
        %v410 = vsub.f32 %v394, %v402
        %v411 = vsub.f32 %v395, %v403
        %v412 = vsub.f32 %v396, %v404
        %v413 = vsub.f32 %v397, %v405
        %v414 = vadd.f32 %v327, 1.0
        %v415 = vlog2.pop %v414
        %v416 = vmul.f32 %v415, 0.6931472
        %v417 = vmul.f32 -0.5, %v327
        %v418 = vadd.f32 %v417, 1.0
        %v419 = vmul.f32 %v418, %v327
        %v420 = vand.u32 2147483647, %v327
        %vm421 = vcmp.lt.f32.partialorder %v420, 0.0004427343
        %v422 = vsel %vm421, %v419, %v416
        %v423 = vadd.f32 %v329, 1.0
        %v424 = vlog2.pop %v423
        %v425 = vmul.f32 %v424, 0.6931472
        %v426 = vmul.f32 -0.5, %v329
        %v427 = vadd.f32 %v426, 1.0
        %v428 = vmul.f32 %v427, %v329
        %v429 = vand.u32 2147483647, %v329
        %vm430 = vcmp.lt.f32.partialorder %v429, 0.0004427343
        %v431 = vsel %vm430, %v428, %v425
        %v432 = vadd.f32 %v331, 1.0
        %v433 = vlog2.pop %v432
        %v434 = vmul.f32 %v433, 0.6931472
        %v435 = vmul.f32 -0.5, %v331
        %v436 = vadd.f32 %v435, 1.0
        %v437 = vmul.f32 %v436, %v331
        %v438 = vand.u32 2147483647, %v331
        %vm439 = vcmp.lt.f32.partialorder %v438, 0.0004427343
        %v440 = vsel %vm439, %v437, %v434
        %v441 = vadd.f32 %v333, 1.0
        %v442 = vlog2.pop %v441
        %v443 = vmul.f32 %v442, 0.6931472
        %v444 = vmul.f32 -0.5, %v333
        %v445 = vadd.f32 %v444, 1.0
        %v446 = vmul.f32 %v445, %v333
        %v447 = vand.u32 2147483647, %v333
        %vm448 = vcmp.lt.f32.partialorder %v447, 0.0004427343
        %v449 = vsel %vm448, %v446, %v443
        %v450 = vadd.f32 %v335, 1.0
        %v451 = vlog2.pop %v450
        %v452 = vmul.f32 %v451, 0.6931472
        %v453 = vmul.f32 -0.5, %v335
        %v454 = vadd.f32 %v453, 1.0
        %v455 = vmul.f32 %v454, %v335
        %v456 = vand.u32 2147483647, %v335
        %vm457 = vcmp.lt.f32.partialorder %v456, 0.0004427343
        %v458 = vsel %vm457, %v455, %v452
        %v459 = vadd.f32 %v337, 1.0
        %v460 = vlog2.pop %v459
        %v461 = vmul.f32 %v460, 0.6931472
        %v462 = vmul.f32 -0.5, %v337
        %v463 = vadd.f32 %v462, 1.0
        %v464 = vmul.f32 %v463, %v337
        %v465 = vand.u32 2147483647, %v337
        %vm466 = vcmp.lt.f32.partialorder %v465, 0.0004427343
        %v467 = vsel %vm466, %v464, %v461
        %v468 = vadd.f32 %v339, 1.0
        %v469 = vlog2.pop %v468
        %v470 = vmul.f32 %v469, 0.6931472
        %v471 = vmul.f32 -0.5, %v339
        %v472 = vadd.f32 %v471, 1.0
        %v473 = vmul.f32 %v472, %v339
        %v474 = vand.u32 2147483647, %v339
        %vm475 = vcmp.lt.f32.partialorder %v474, 0.0004427343
        %v476 = vsel %vm475, %v473, %v470
        %v477 = vadd.f32 %v341, 1.0
        %v478 = vlog2.pop %v477
        %v479 = vmul.f32 %v478, 0.6931472
        %v480 = vmul.f32 -0.5, %v341
        %v481 = vadd.f32 %v480, 1.0
        %v482 = vmul.f32 %v481, %v341
        %v483 = vand.u32 2147483647, %v341
        %vm484 = vcmp.lt.f32.partialorder %v483, 0.0004427343
        %v485 = vsel %vm484, %v482, %v479
        %v486 = vadd.f32 %v406, %v422
        %v487 = vadd.f32 %v407, %v431
        %v488 = vadd.f32 %v408, %v440
        %v489 = vadd.f32 %v409, %v449
        %v490 = vadd.f32 %v410, %v458
        %v491 = vadd.f32 %v411, %v467
        %v492 = vadd.f32 %v412, %v476
        %v493 = vadd.f32 %v413, %v485
        %v494 = vmul.f32 %v382, %v302
        %v495 = vmul.f32 %v383, %v303
        %v496 = vmul.f32 %v384, %v304
        %v497 = vmul.f32 %v385, %v305
        %v498 = vmul.f32 %v386, %v306
        %v499 = vmul.f32 %v387, %v307
        %v500 = vmul.f32 %v388, %v308
        %v501 = vmul.f32 %v389, %v309
        %v502 = vsub.f32 1.0, %v382
        %v503 = vsub.f32 1.0, %v383
        %v504 = vsub.f32 1.0, %v384
        %v505 = vsub.f32 1.0, %v385
        %v506 = vsub.f32 1.0, %v386
        %v507 = vsub.f32 1.0, %v387
        %v508 = vsub.f32 1.0, %v388
        %v509 = vsub.f32 1.0, %v389
        %v510 = vsub.f32 1.0, %v302
        %v511 = vsub.f32 1.0, %v303
        %v512 = vsub.f32 1.0, %v304
        %v513 = vsub.f32 1.0, %v305
        %v514 = vsub.f32 1.0, %v306
        %v515 = vsub.f32 1.0, %v307
        %v516 = vsub.f32 1.0, %v308
        %v517 = vsub.f32 1.0, %v309
        %v518 = vmul.f32 %v502, %v510
        %v519 = vmul.f32 %v503, %v511
        %v520 = vmul.f32 %v504, %v512
        %v521 = vmul.f32 %v505, %v513
        %v522 = vmul.f32 %v506, %v514
        %v523 = vmul.f32 %v507, %v515
        %v524 = vmul.f32 %v508, %v516
        %v525 = vmul.f32 %v509, %v517
        %v526 = vadd.f32 %v494, %v518
        %v527 = vadd.f32 %v495, %v519
        %v528 = vadd.f32 %v496, %v520
        %v529 = vadd.f32 %v497, %v521
        %v530 = vadd.f32 %v498, %v522
        %v531 = vadd.f32 %v499, %v523
        %v532 = vadd.f32 %v500, %v524
        %v533 = vadd.f32 %v501, %v525
        %v534 = vsub.f32 1.0, %v526
        %v535 = vsub.f32 1.0, %v527
        %v536 = vsub.f32 1.0, %v528
        %v537 = vsub.f32 1.0, %v529
        %v538 = vsub.f32 1.0, %v530
        %v539 = vsub.f32 1.0, %v531
        %v540 = vsub.f32 1.0, %v532
        %v541 = vsub.f32 1.0, %v533
        %v542 = vmul.f32 %v534, %v534
        %v543 = vmul.f32 %v535, %v535
        %v544 = vmul.f32 %v536, %v536
        %v545 = vmul.f32 %v537, %v537
        %v546 = vmul.f32 %v538, %v538
        %v547 = vmul.f32 %v539, %v539
        %v548 = vmul.f32 %v540, %v540
        %v549 = vmul.f32 %v541, %v541
        %v550 = vmul.f32 %v486, %v542
        %v551 = vmul.f32 %v487, %v543
        %v552 = vmul.f32 %v488, %v544
        %v553 = vmul.f32 %v489, %v545
        %v554 = vmul.f32 %v490, %v546
        %v555 = vmul.f32 %v491, %v547
        %v556 = vmul.f32 %v492, %v548
        %v557 = vmul.f32 %v493, %v549
        %v558 = vmul.f32 %v302, 0.25
        %v559 = vmul.f32 %v303, 0.25
        %v560 = vmul.f32 %v304, 0.25
        %v561 = vmul.f32 %v305, 0.25
        %v562 = vmul.f32 %v306, 0.25
        %v563 = vmul.f32 %v307, 0.25
        %v564 = vmul.f32 %v308, 0.25
        %v565 = vmul.f32 %v309, 0.25
        %v566 = vmul.f32 %v510, 0.75
        %v567 = vmul.f32 %v511, 0.75
        %v568 = vmul.f32 %v512, 0.75
        %v569 = vmul.f32 %v513, 0.75
        %v570 = vmul.f32 %v514, 0.75
        %v571 = vmul.f32 %v515, 0.75
        %v572 = vmul.f32 %v516, 0.75
        %v573 = vmul.f32 %v517, 0.75
        %v574 = vadd.f32 %v558, %v566
        %v575 = vadd.f32 %v559, %v567
        %v576 = vadd.f32 %v560, %v568
        %v577 = vadd.f32 %v561, %v569
        %v578 = vadd.f32 %v562, %v570
        %v579 = vadd.f32 %v563, %v571
        %v580 = vadd.f32 %v564, %v572
        %v581 = vadd.f32 %v565, %v573
        %v582 = vmul.f32 %v574, %v550
        %v583 = vmul.f32 %v575, %v551
        %v584 = vmul.f32 %v576, %v552
        %v585 = vmul.f32 %v577, %v553
        %v586 = vmul.f32 %v578, %v554
        %v587 = vmul.f32 %v579, %v555
        %v588 = vmul.f32 %v580, %v556
        %v589 = vmul.f32 %v581, %v557
        %v590 = vld [vmem:[%s229] sm:$0xff]
        %v591 = vld [vmem:[%s229 + $0x20] sm:$0xff]
        %v592 = vld [vmem:[%s229 + $0x40] sm:$0xff]
        %v593 = vld [vmem:[%s229 + $0x60] sm:$0xff]
        %v594 = vld [vmem:[%s229 + $0x80] sm:$0xff]
        %v595 = vld [vmem:[%s229 + $0xa0] sm:$0xff]
        %v596 = vld [vmem:[%s229 + $0xc0] sm:$0xff]
        %v597 = vld [vmem:[%s229 + $0xe0] sm:$0xff]
        %v598 = vadd.f32 %v582, 0.0
        %v599 = vadd.f32 %v583, 0.0
        %v600 = vadd.f32 %v584, 0.0
        %v601 = vadd.f32 %v585, 0.0
        %v602 = vadd.f32 %v586, 0.0
        %v603 = vadd.f32 %v587, 0.0
        %v604 = vadd.f32 %v588, 0.0
        %v605 = vadd.f32 %v589, 0.0
        %v606 = vadd.f32 %v590, %v598
        %v607 = vadd.f32 %v591, %v599
        %v608 = vadd.f32 %v592, %v600
        %v609 = vadd.f32 %v593, %v601
        %v610 = vadd.f32 %v594, %v602
        %v611 = vadd.f32 %v595, %v603
        %v612 = vadd.f32 %v596, %v604
        %v613 = vadd.f32 %v597, %v605
        %614 = vst [vmem:[%s229] sm:$0xff] %v606
        %615 = vst [vmem:[%s229 + $0x20] sm:$0xff] %v607
        %616 = vst [vmem:[%s229 + $0x40] sm:$0xff] %v608
        %617 = vst [vmem:[%s229 + $0x60] sm:$0xff] %v609
        %618 = vst [vmem:[%s229 + $0x80] sm:$0xff] %v610
        %619 = vst [vmem:[%s229 + $0xa0] sm:$0xff] %v611
        %620 = vst [vmem:[%s229 + $0xc0] sm:$0xff] %v612
        %621 = vst [vmem:[%s229 + $0xe0] sm:$0xff] %v613
        %v622 = vld [vmem:[%s229 + $0x8] sm:$0xff]
        %v623 = vld [vmem:[%s229 + $0x28] sm:$0xff]
        %v624 = vld [vmem:[%s229 + $0x48] sm:$0xff]
        %v625 = vld [vmem:[%s229 + $0x68] sm:$0xff]
        %v626 = vld [vmem:[%s229 + $0x88] sm:$0xff]
        %v627 = vld [vmem:[%s229 + $0xa8] sm:$0xff]
        %v628 = vld [vmem:[%s229 + $0xc8] sm:$0xff]
        %v629 = vld [vmem:[%s229 + $0xe8] sm:$0xff]
        %v630 = vadd.f32 %v494, 0.0
        %v631 = vadd.f32 %v495, 0.0
        %v632 = vadd.f32 %v496, 0.0
        %v633 = vadd.f32 %v497, 0.0
        %v634 = vadd.f32 %v498, 0.0
        %v635 = vadd.f32 %v499, 0.0
        %v636 = vadd.f32 %v500, 0.0
        %v637 = vadd.f32 %v501, 0.0
        %v638 = vadd.f32 %v622, %v630
        %v639 = vadd.f32 %v623, %v631
        %v640 = vadd.f32 %v624, %v632
        %v641 = vadd.f32 %v625, %v633
        %v642 = vadd.f32 %v626, %v634
        %v643 = vadd.f32 %v627, %v635
        %v644 = vadd.f32 %v628, %v636
        %v645 = vadd.f32 %v629, %v637
        %646 = vst [vmem:[%s229 + $0x8] sm:$0xff] %v638
        %647 = vst [vmem:[%s229 + $0x28] sm:$0xff] %v639
        %648 = vst [vmem:[%s229 + $0x48] sm:$0xff] %v640
        %649 = vst [vmem:[%s229 + $0x68] sm:$0xff] %v641
        %650 = vst [vmem:[%s229 + $0x88] sm:$0xff] %v642
        %651 = vst [vmem:[%s229 + $0xa8] sm:$0xff] %v643
        %652 = vst [vmem:[%s229 + $0xc8] sm:$0xff] %v644
        %653 = vst [vmem:[%s229 + $0xe8] sm:$0xff] %v645
        %v654 = vld [vmem:[%s229 + $0x10] sm:$0xff]
        %v655 = vld [vmem:[%s229 + $0x30] sm:$0xff]
        %v656 = vld [vmem:[%s229 + $0x50] sm:$0xff]
        %v657 = vld [vmem:[%s229 + $0x70] sm:$0xff]
        %v658 = vld [vmem:[%s229 + $0x90] sm:$0xff]
        %v659 = vld [vmem:[%s229 + $0xb0] sm:$0xff]
        %v660 = vld [vmem:[%s229 + $0xd0] sm:$0xff]
        %v661 = vld [vmem:[%s229 + $0xf0] sm:$0xff]
        %v662 = vadd.f32 %v382, 0.0
        %v663 = vadd.f32 %v383, 0.0
        %v664 = vadd.f32 %v384, 0.0
        %v665 = vadd.f32 %v385, 0.0
        %v666 = vadd.f32 %v386, 0.0
        %v667 = vadd.f32 %v387, 0.0
        %v668 = vadd.f32 %v388, 0.0
        %v669 = vadd.f32 %v389, 0.0
        %v670 = vadd.f32 %v654, %v662
        %v671 = vadd.f32 %v655, %v663
        %v672 = vadd.f32 %v656, %v664
        %v673 = vadd.f32 %v657, %v665
        %v674 = vadd.f32 %v658, %v666
        %v675 = vadd.f32 %v659, %v667
        %v676 = vadd.f32 %v660, %v668
        %v677 = vadd.f32 %v661, %v669
        %678 = vst [vmem:[%s229 + $0x10] sm:$0xff] %v670
        %679 = vst [vmem:[%s229 + $0x30] sm:$0xff] %v671
        %680 = vst [vmem:[%s229 + $0x50] sm:$0xff] %v672
        %681 = vst [vmem:[%s229 + $0x70] sm:$0xff] %v673
        %682 = vst [vmem:[%s229 + $0x90] sm:$0xff] %v674
        %683 = vst [vmem:[%s229 + $0xb0] sm:$0xff] %v675
        %684 = vst [vmem:[%s229 + $0xd0] sm:$0xff] %v676
        %685 = vst [vmem:[%s229 + $0xf0] sm:$0xff] %v677
        %v686 = vld [vmem:[%s229 + $0x18] sm:$0xff]
        %v687 = vld [vmem:[%s229 + $0x38] sm:$0xff]
        %v688 = vld [vmem:[%s229 + $0x58] sm:$0xff]
        %v689 = vld [vmem:[%s229 + $0x78] sm:$0xff]
        %v690 = vld [vmem:[%s229 + $0x98] sm:$0xff]
        %v691 = vld [vmem:[%s229 + $0xb8] sm:$0xff]
        %v692 = vld [vmem:[%s229 + $0xd8] sm:$0xff]
        %v693 = vld [vmem:[%s229 + $0xf8] sm:$0xff]
        %v694 = vadd.f32 %v302, 0.0
        %v695 = vadd.f32 %v303, 0.0
        %v696 = vadd.f32 %v304, 0.0
        %v697 = vadd.f32 %v305, 0.0
        %v698 = vadd.f32 %v306, 0.0
        %v699 = vadd.f32 %v307, 0.0
        %v700 = vadd.f32 %v308, 0.0
        %v701 = vadd.f32 %v309, 0.0
        %v702 = vadd.f32 %v686, %v694
        %v703 = vadd.f32 %v687, %v695
        %v704 = vadd.f32 %v688, %v696
        %v705 = vadd.f32 %v689, %v697
        %v706 = vadd.f32 %v690, %v698
        %v707 = vadd.f32 %v691, %v699
        %v708 = vadd.f32 %v692, %v700
        %v709 = vadd.f32 %v693, %v701
        %710 = vst [vmem:[%s229 + $0x18] sm:$0xff] %v702
        %711 = vst [vmem:[%s229 + $0x38] sm:$0xff] %v703
        %712 = vst [vmem:[%s229 + $0x58] sm:$0xff] %v704
        %713 = vst [vmem:[%s229 + $0x78] sm:$0xff] %v705
        %714 = vst [vmem:[%s229 + $0x98] sm:$0xff] %v706
        %715 = vst [vmem:[%s229 + $0xb8] sm:$0xff] %v707
        %716 = vst [vmem:[%s229 + $0xd8] sm:$0xff] %v708
        %717 = vst [vmem:[%s229 + $0xf8] sm:$0xff] %v709
        %s718 = sand.u32 %s109, 1
        %s719 = scalar_lea.sflag [#allocation4], %s718
        %s720 = sand.u32 %s109, 1
        %s721 = smul.addr %s720, 256
        %s722 = scalar_lea.vmem [#allocation7], %s721
        // Predicated region
        $region41: #{tpu_custom_call.1} parent=27 // pred_check
          %p723 = pneg %p119
        $region42: #{tpu_custom_call.1} parent=27 // pred_check_branch
          %725 = sbr.rel (%p723) target = $region44
        $region43: #{tpu_custom_call.1} parent=27 // pred_region
          %s726 = smul.u32 8, %s28
          %s728 = ssub.s32 4096, 4096
          %729 = vsyncadd %s719, %s728
          %s730 = smul.addr %s726, 4
          %s731 = smul.addr %s27, 32
          %s732 = sadd.s32 %s730, %s731
          %s733 = smul.addr %s732, 128
          %s734 = scalar_lea.hbm %s2, %s733
          %s735 = sshll.u32 %s722, 4
          %s736 = int_to_ptr.vmem [resolvable:$true] %s735
          %741 = dma.vmem_to_hbm [thread:$0]  %s736, 4096, %s734, %s719, 128, 128, 8
        $region44: #{tpu_custom_call.1} parent=27 // pred_fallthru
          _
      $region28: #{tpu_custom_call.1} parent=5 // pred_fallthru
        _
      %p742 = scmp.le.s32.totalorder 2, %s17
      // Predicated region
      $region45: #{tpu_custom_call.1} parent=5 // pred_check
        %p743 = pneg %p742
      $region46: #{tpu_custom_call.1} parent=5 // pred_check_branch
        %745 = sbr.rel (%p743) target = $region48
      $region47: #{tpu_custom_call.1} parent=5 // pred_region
        %s746 = ssub.s32 %s17, 2
        // Predicated region
        $region49: #{tpu_custom_call.1} parent=47 // pred_check
          %p747 = pneg %p125
        $region50: #{tpu_custom_call.1} parent=47 // pred_check_branch
          %749 = sbr.rel (%p747) target = $region52
        $region51: #{tpu_custom_call.1} parent=47 // pred_region
          %s750 = sand.u32 %s110, 1
          %s751 = scalar_lea.sflag [#allocation4], %s750
          %s752 = sand.u32 %s110, 1
          %s753 = smul.addr %s752, 256
          %s754 = scalar_lea.vmem [#allocation7], %s753
          %755 = dma.done %s751, 4096
        $region52: #{tpu_custom_call.1} parent=47 // pred_fallthru
          _
      $region48: #{tpu_custom_call.1} parent=5 // pred_fallthru
        _
    $region6: #{tpu_custom_call.1} parent=1 // loop_footer
      %s21 = sadd.s32 1, %s17
    $region7: #{tpu_custom_call.1} parent=1 // loop_footer_branch
      %16 = sbr.rel target = $region3
    $region8: #{tpu_custom_call.1} parent=1 // loop_exit
      _
    %756 = vsyncpa [#allocation3], 1
    %s757 = scalar_lea.sflag [#allocation3], 1
    %758 = vsyncpa %s757, 1
    %759 = vsyncpa [#allocation6], 1
    %s760 = scalar_lea.sflag [#allocation6], 1
    %761 = vsyncpa %s760, 1
    %762 = vsyncpa [#allocation4], 1
    %s763 = scalar_lea.sflag [#allocation4], 1
    %764 = vsyncpa %s763, 1

</llo_original>
